<compile_context>
chip_gen: v7x
topology: tpu7x:2x2x1
jax: 0.10.0
libtpu: 0.0.40
codegen_flags: <defaults>
</compile_context>

<pallas_src>
import jax
import jax.numpy as jnp
import numpy as np
from jax.experimental import pallas as pl
from jax.experimental.pallas import tpu as pltpu

EPS = 1e-5
S_SUBBANDS = 4  # SubSpectralNorm(planes, 4)


# ----------------------------------------------------------------------------
# Parameter setup (deterministic, synthetic).
# ----------------------------------------------------------------------------
def _bn_params(key, n):
    k1, k2, k3, k4 = jax.random.split(key, 4)
    gamma = 1.0 + 0.1 * jax.random.normal(k1, (n,), jnp.float32)
    beta = 0.1 * jax.random.normal(k2, (n,), jnp.float32)
    mean = 0.1 * jax.random.normal(k3, (n,), jnp.float32)
    var = 1.0 + 0.1 * jax.random.uniform(k4, (n,), jnp.float32)
    return gamma, beta, mean, var


def _affine(bnp):
    g, b, m, v = bnp
    s = g / jnp.sqrt(v + EPS)
    return s, b - m * s


def init_params(key, inplanes, planes):
    ks = jax.random.split(key, 7)
    return {
        # conv1x1_1.weight[:, :, 0, 0] : (planes, inplanes)
        "w1": 0.3 * jax.random.normal(ks[0], (planes, inplanes), jnp.float32),
        # conv1x1_2.weight[:, :, 0, 0] : (planes, planes)
        "w2": 0.3 * jax.random.normal(ks[1], (planes, planes), jnp.float32),
        # freq_dw_conv.weight[:, 0, :, 0] : (planes, 3)
        "kf": 0.3 * jax.random.normal(ks[2], (planes, 3), jnp.float32),
        # temp_dw_conv.weight[:, 0, 0, :] : (planes, 3)
        "kt": 0.3 * jax.random.normal(ks[3], (planes, 3), jnp.float32),
        "bn1": _bn_params(ks[4], planes),
        "bn2": _bn_params(ks[5], planes),
        "ssn": _bn_params(ks[6], planes * S_SUBBANDS),
    }


def _auto_samples_per_block(n):
    # Big enough per grid step to amortize the ~0.35 us / ~600-cycle step
    # overhead, capped at 64 so the f32 intermediates (+ double-buffered bf16
    # I/O) stay comfortably under v5e's 16 MiB default scoped-VMEM limit, and
    # >= 2 grid steps whenever the batch allows it so v7x's two TensorCores
    # both get non-trivial work from dimension_semantics=("parallel",).
    if n <= 4:
        return n
    bt = min(64, max(1, n // 2))
    while n % bt:
        bt -= 1
    return bt


# ----------------------------------------------------------------------------
# Pallas kernel + wrapper.
# ----------------------------------------------------------------------------
def transition_block(x_nchw, params, *, samples_per_block=None,
                     io_dtype=jnp.bfloat16):
    n, c_in, h, w = x_nchw.shape
    c = params["w1"].shape[0]
    s_sub = S_SUBBANDS
    hw = h * w
    assert w % s_sub == 0, "SubSpectralNorm requires W % S == 0"

    bt = _auto_samples_per_block(n) if samples_per_block is None else samples_per_block
    assert n % bt == 0

    f32 = jnp.float32
    s1, b1 = _affine(params["bn1"])
    s2, b2 = _affine(params["bn2"])
    sssn, bssn = _affine(params["ssn"])                      # (C*S,)

    # ---- parameter folding / map precomputation (wrapper side, tiny) --------
    # conv1x1_1 with bn1 scale folded; shaped (Cin, C, 1) for sublane bcast.
    w1_bc = (params["w1"] * s1[:, None]).T[:, :, None].astype(f32)   # (Cin, C, 1)
    b1_bc = b1[:, None].astype(f32)                                  # (C, 1)
    kf_bc = params["kf"].T[:, :, None].astype(f32)                   # (3, C, 1)

    # SubSpectralNorm (eval) as two (C, H*W) per-position affine maps.
    # The PyTorch reshape (N,C,T,F)->(N,C*S,T,F//S) splits each (c, raster)
    # into S contiguous chunks of length H*W/S -> subband = p // (H*W/S).
    sub_of_p = jnp.arange(hw) // (hw // s_sub)                        # (HW,)
    ssn_scale = sssn.reshape(c, s_sub)[:, sub_of_p].astype(f32)       # (C, HW)
    ssn_shift = bssn.reshape(c, s_sub)[:, sub_of_p].astype(f32)       # (C, HW)

    # Temporal depthwise taps with bn2 scale and the 1/H of the H-mean folded;
    # the W-boundary (zero-pad) masks are folded into the two outer taps as
    # (C, H*W) maps so the kernel needs no in-kernel index math at all.
    ktf = params["kt"] * (s2 / h)[:, None]                            # (C, 3)
    col = jnp.arange(hw) % w
    left_ok = (col > 0).astype(f32)                                   # col-1 exists
    right_ok = (col < w - 1).astype(f32)                              # col+1 exists
    kt0_map = (ktf[:, 0][:, None] * left_ok[None, :]).astype(f32)     # (C, HW)
    kt1_col = ktf[:, 1][:, None].astype(f32)                          # (C, 1)
    kt2_map = (ktf[:, 2][:, None] * right_ok[None, :]).astype(f32)    # (C, HW)

    b2_bc = b2[:, None].astype(f32)                                   # (C, 1)
    w2_bc = params["w2"].T[:, :, None].astype(f32)                    # (C src, C dst, 1)

    # NCHW -> (N, Cin, H*W) is a contiguous (free) reshape; bf16 halves HBM I/O.
    x_flat = x_nchw.reshape(n, c_in, hw).astype(io_dtype)

    def kernel(x_ref, w1_ref, b1_ref, kf_ref, ssn_s_ref, ssn_b_ref,
               kt0_ref, kt1_ref, kt2_ref, b2_ref, w2_ref, o_ref):
        x = x_ref[...].astype(f32)                           # (bt, Cin, HW), f32 math

        # --- conv1x1_1 (+ folded bn1 scale): Cin broadcast-FMAs on the VPU ---
        # (At realistic planes >= ~32-64 move both 1x1 convs to the MXU; at
        #  C = 8 the VPU path avoids MXU fill/drain on a K=4/8 contraction.)
        y = w1_ref[0][None] * x[:, 0:1, :]
        for ci in range(1, c_in):
            y = y + w1_ref[ci][None] * x[:, ci:ci + 1, :]
        y = jnp.maximum(y + b1_ref[...][None], 0.0)          # bn1 bias + ReLU

        # --- freq_dw_conv (3,1) along H == +/-W lane shifts of the flat raster.
        # Built as zero-filled full-width shifts: 256-lane (2 full vregs)
        # intermediates, no 288-lane halo concat, and the zero fill IS the
        # top/bottom-row mask (sign-convention-safe equivalent of
        # pltpu.roll(y, +/-w) + edge masks).
        zw = jnp.zeros((bt, c, w), f32)
        ym1 = jnp.concatenate([zw, y[:, :, :hw - w]], axis=2)   # value at h-1
        yp1 = jnp.concatenate([y[:, :, w:], zw], axis=2)        # value at h+1
        y = ym1 * kf_ref[0][None] + y * kf_ref[1][None] + yp1 * kf_ref[2][None]

        # --- SubSpectralNorm (eval): one FMA with precomputed (C, HW) maps ---
        y = y * ssn_s_ref[...][None] + ssn_b_ref[...][None]
        aux = y                                               # residual branch

        # --- sum over H (1/H and bn2 scale folded into the temporal taps):
        # circular roll doubling tree on the XLU.  Thanks to the circular wrap
        # EVERY lane ends up holding its column's sum, i.e. the H-mean is
        # already broadcast back over H at full (bt, C, HW) width -- no
        # narrow slabs and no [m2]*H concat later.
        yflat = y.reshape(bt * c, hw)
        acc = yflat
        if h & (h - 1) == 0:
            step = w
            while step < hw:
                acc = acc + pltpu.roll(acc, step, axis=1)
                step *= 2
        else:  # non power-of-two H: direction-agnostic roll accumulation
            for hh in range(1, h):
                acc = acc + pltpu.roll(yflat, hh * w, axis=1)
        m = acc.reshape(bt, c, hw)                            # column sums, full width

        # --- temp_dw_conv (1,3) along W at full width; the W-edge masks are
        # folded into kt0/kt2 maps, so the +/-1 shifts need no extra masking.
        z1 = jnp.zeros((bt, c, 1), f32)
        mL = jnp.concatenate([z1, m[:, :, :hw - 1]], axis=2)  # value at col-1
        mR = jnp.concatenate([m[:, :, 1:], z1], axis=2)       # value at col+1
        m = mL * kt0_ref[...][None] + m * kt1_ref[...][None] + mR * kt2_ref[...][None]

        # --- bn2 bias + SiLU (sigmoid -> EUP slot) ---
        m = m + b2_ref[...][None]
        m = m * jax.nn.sigmoid(m)

        # --- conv1x1_2: C broadcast-FMAs ---
        m2 = w2_ref[0][None] * m[:, 0:1, :]
        for cc in range(1, c):
            m2 = m2 + w2_ref[cc][None] * m[:, cc:cc + 1, :]
        # channel_drop (Dropout2d) is identity at inference.
        # TODO(synk): training-mode channel dropout (random per-(N,C) zeroing) not implemented.

        # --- residual add (m2 already full width), ReLU, dense store:
        # (bt, C) folded into one sublane axis -> fully packed bf16 tiles and
        # unmasked lane-dense vst.
        out = jnp.maximum(aux + m2, 0.0)
        o_ref[...] = out.reshape(bt * c, hw).astype(o_ref.dtype)

    def full_spec(shape):
        return pl.BlockSpec(shape, lambda i, _ndim=len(shape): (0,) * _ndim)

    out_flat = pl.pallas_call(
        kernel,
        out_shape=jax.ShapeDtypeStruct((n * c, hw), io_dtype),
        grid_spec=pltpu.PrefetchScalarGridSpec(
            num_scalar_prefetch=0,
            grid=(n // bt,),
            in_specs=[
                pl.BlockSpec((bt, c_in, hw), lambda i: (i, 0, 0)),   # x
                full_spec((c_in, c, 1)),                             # w1 (bn1 folded)
                full_spec((c, 1)),                                   # b1
                full_spec((3, c, 1)),                                # kf
                full_spec((c, hw)),                                  # ssn scale map
                full_spec((c, hw)),                                  # ssn shift map
                full_spec((c, hw)),                                  # kt tap0 * left mask
                full_spec((c, 1)),                                   # kt tap1
                full_spec((c, hw)),                                  # kt tap2 * right mask
                full_spec((c, 1)),                                   # b2
                full_spec((c, c, 1)),                                # w2 [src, dst]
            ],
            out_specs=pl.BlockSpec((bt * c, hw), lambda i: (i, 0)),
        ),
        compiler_params=pltpu.CompilerParams(
            dimension_semantics=("parallel",)),
    )(x_flat, w1_bc, b1_bc, kf_bc, ssn_scale, ssn_shift,
      kt0_map, kt1_col, kt2_map, b2_bc, w2_bc)

    # (N*C, H*W) -> NCHW is a free contiguous reshape (rows are sample-major).
    return out_flat.reshape(n, c, h, w)


# ----------------------------------------------------------------------------
# Pure-JAX NCHW reference (mirrors the PyTorch eval forward) for verification.
# ----------------------------------------------------------------------------
def ref_forward(x, params):
    w1, w2 = params["w1"], params["w2"]
    kf, kt = params["kf"], params["kt"]
    s1, b1 = _affine(params["bn1"])
    s2, b2 = _affine(params["bn2"])
    sssn, bssn = _affine(params["ssn"])
    N, Cin, H, W = x.shape
    C = w1.shape[0]

    out = jnp.einsum("oc,nchw->nohw", w1, x)
    out = out * s1[None, :, None, None] + b1[None, :, None, None]
    out = jnp.maximum(out, 0.0)
    op = jnp.pad(out, ((0, 0), (0, 0), (1, 1), (0, 0)))
    out = (kf[:, 0][None, :, None, None] * op[:, :, 0:H] +
           kf[:, 1][None, :, None, None] * op[:, :, 1:H + 1] +
           kf[:, 2][None, :, None, None] * op[:, :, 2:H + 2])
    r = out.reshape(N, C * S_SUBBANDS, H, W // S_SUBBANDS)
    r = r * sssn[None, :, None, None] + bssn[None, :, None, None]
    out = r.reshape(N, C, H, W)
    aux = out
    m = out.mean(axis=2, keepdims=True)
    mp = jnp.pad(m, ((0, 0), (0, 0), (0, 0), (1, 1)))
    m = (kt[:, 0][None, :, None, None] * mp[:, :, :, 0:W] +
         kt[:, 1][None, :, None, None] * mp[:, :, :, 1:W + 1] +
         kt[:, 2][None, :, None, None] * mp[:, :, :, 2:W + 2])
    m = m * s2[None, :, None, None] + b2[None, :, None, None]
    m = m * jax.nn.sigmoid(m)
    m = jnp.einsum("oc,nchw->nohw", w2, m)
    return jnp.maximum(aux + m, 0.0)


if __name__ == "__main__":
    key = jax.random.PRNGKey(0)
    kx, kp = jax.random.split(key)

    N, inplanes, planes, H, W = 2, 4, 8, 16, 16
    x = jax.random.normal(kx, (N, inplanes, H, W), jnp.float32)
    params = init_params(kp, inplanes, planes)

    # bf16 HBM I/O: quantize the input once so kernel and reference consume the
    # same values; all in-kernel math stays f32.
    x_q = x.astype(jnp.bfloat16).astype(jnp.float32)

    out = transition_block(x_q, params)
    out = jax.block_until_ready(out)

    ref = ref_forward(x_q, params)
    np.testing.assert_allclose(np.asarray(out.astype(jnp.float32)),
                               np.asarray(ref), rtol=2e-2, atol=2e-2)

    print("KERNEL_OK")
</pallas_src>

<mosaic_0001>
module attributes {stable_mosaic.version = 11 : i64} {
  func.func @kernel(%arg0: i32, %arg1: memref<2x4x256xbf16, #tpu.memory_space<vmem>>, %arg2: memref<4x8x1xf32, #tpu.memory_space<vmem>>, %arg3: memref<8x1xf32, #tpu.memory_space<vmem>>, %arg4: memref<3x8x1xf32, #tpu.memory_space<vmem>>, %arg5: memref<8x256xf32, #tpu.memory_space<vmem>>, %arg6: memref<8x256xf32, #tpu.memory_space<vmem>>, %arg7: memref<8x256xf32, #tpu.memory_space<vmem>>, %arg8: memref<8x1xf32, #tpu.memory_space<vmem>>, %arg9: memref<8x256xf32, #tpu.memory_space<vmem>>, %arg10: memref<8x1xf32, #tpu.memory_space<vmem>>, %arg11: memref<8x8x1xf32, #tpu.memory_space<vmem>>, %arg12: memref<16x256xbf16, #tpu.memory_space<vmem>>) attributes {dimension_semantics = [#tpu.dimension_semantics<parallel>], iteration_bounds = array<i64: 1>, scalar_prefetch = 0 : i64, scratch_operands = 0 : i64, tpu.core_type = #tpu.core_type<tc>, window_params = [{transform_indices = @transform_0, window_bounds = array<i64: 2, 4, 256>}, {pipeline_mode = #tpu.pipeline_mode<synchronous>, transform_indices = @transform_1, window_bounds = array<i64: 4, 8, 1>}, {pipeline_mode = #tpu.pipeline_mode<synchronous>, transform_indices = @transform_2, window_bounds = array<i64: 8, 1>}, {pipeline_mode = #tpu.pipeline_mode<synchronous>, transform_indices = @transform_3, window_bounds = array<i64: 3, 8, 1>}, {pipeline_mode = #tpu.pipeline_mode<synchronous>, transform_indices = @transform_4, window_bounds = array<i64: 8, 256>}, {pipeline_mode = #tpu.pipeline_mode<synchronous>, transform_indices = @transform_5, window_bounds = array<i64: 8, 256>}, {pipeline_mode = #tpu.pipeline_mode<synchronous>, transform_indices = @transform_6, window_bounds = array<i64: 8, 256>}, {pipeline_mode = #tpu.pipeline_mode<synchronous>, transform_indices = @transform_7, window_bounds = array<i64: 8, 1>}, {pipeline_mode = #tpu.pipeline_mode<synchronous>, transform_indices = @transform_8, window_bounds = array<i64: 8, 256>}, {pipeline_mode = #tpu.pipeline_mode<synchronous>, transform_indices = @transform_9, window_bounds = array<i64: 8, 1>}, {pipeline_mode = #tpu.pipeline_mode<synchronous>, transform_indices = @transform_10, window_bounds = array<i64: 8, 8, 1>}, {transform_indices = @transform_11, window_bounds = array<i64: 16, 256>}]} {
    %c0 = arith.constant 0 : index
    %c0_0 = arith.constant 0 : index
    %c0_1 = arith.constant 0 : index
    %0 = vector.load %arg1[%c0, %c0_0, %c0_1] : memref<2x4x256xbf16, #tpu.memory_space<vmem>>, vector<2x4x256xbf16>
    %1 = arith.extf %0 : vector<2x4x256xbf16> to vector<2x4x256xf32>
    %c0_2 = arith.constant 0 : index
    %c0_3 = arith.constant 0 : index
    %c0_4 = arith.constant 0 : index
    %2 = vector.load %arg2[%c0_2, %c0_3, %c0_4] : memref<4x8x1xf32, #tpu.memory_space<vmem>>, vector<1x8x1xf32>
    %3 = vector.shape_cast %2 : vector<1x8x1xf32> to vector<8x1xf32>
    %4 = vector.shape_cast %3 : vector<8x1xf32> to vector<1x8x1xf32>
    %5 = vector.extract_strided_slice %1 {offsets = [0, 0, 0], sizes = [2, 1, 256], strides = [1, 1, 1]} : vector<2x4x256xf32> to vector<2x1x256xf32>
    %6 = vector.broadcast %4 : vector<1x8x1xf32> to vector<2x8x256xf32>
    %7 = vector.broadcast %5 : vector<2x1x256xf32> to vector<2x8x256xf32>
    %8 = arith.mulf %6, %7 : vector<2x8x256xf32>
    %c1 = arith.constant 1 : index
    %c0_5 = arith.constant 0 : index
    %c0_6 = arith.constant 0 : index
    %9 = vector.load %arg2[%c1, %c0_5, %c0_6] : memref<4x8x1xf32, #tpu.memory_space<vmem>>, vector<1x8x1xf32>
    %10 = vector.shape_cast %9 : vector<1x8x1xf32> to vector<8x1xf32>
    %11 = vector.shape_cast %10 : vector<8x1xf32> to vector<1x8x1xf32>
    %12 = vector.extract_strided_slice %1 {offsets = [0, 1, 0], sizes = [2, 1, 256], strides = [1, 1, 1]} : vector<2x4x256xf32> to vector<2x1x256xf32>
    %13 = vector.broadcast %11 : vector<1x8x1xf32> to vector<2x8x256xf32>
    %14 = vector.broadcast %12 : vector<2x1x256xf32> to vector<2x8x256xf32>
    %15 = arith.mulf %13, %14 : vector<2x8x256xf32>
    %16 = arith.addf %8, %15 : vector<2x8x256xf32>
    %c2 = arith.constant 2 : index
    %c0_7 = arith.constant 0 : index
    %c0_8 = arith.constant 0 : index
    %17 = vector.load %arg2[%c2, %c0_7, %c0_8] : memref<4x8x1xf32, #tpu.memory_space<vmem>>, vector<1x8x1xf32>
    %18 = vector.shape_cast %17 : vector<1x8x1xf32> to vector<8x1xf32>
    %19 = vector.shape_cast %18 : vector<8x1xf32> to vector<1x8x1xf32>
    %20 = vector.extract_strided_slice %1 {offsets = [0, 2, 0], sizes = [2, 1, 256], strides = [1, 1, 1]} : vector<2x4x256xf32> to vector<2x1x256xf32>
    %21 = vector.broadcast %19 : vector<1x8x1xf32> to vector<2x8x256xf32>
    %22 = vector.broadcast %20 : vector<2x1x256xf32> to vector<2x8x256xf32>
    %23 = arith.mulf %21, %22 : vector<2x8x256xf32>
    %24 = arith.addf %16, %23 : vector<2x8x256xf32>
    %c3 = arith.constant 3 : index
    %c0_9 = arith.constant 0 : index
    %c0_10 = arith.constant 0 : index
    %25 = vector.load %arg2[%c3, %c0_9, %c0_10] : memref<4x8x1xf32, #tpu.memory_space<vmem>>, vector<1x8x1xf32>
    %26 = vector.shape_cast %25 : vector<1x8x1xf32> to vector<8x1xf32>
    %27 = vector.shape_cast %26 : vector<8x1xf32> to vector<1x8x1xf32>
    %28 = vector.extract_strided_slice %1 {offsets = [0, 3, 0], sizes = [2, 1, 256], strides = [1, 1, 1]} : vector<2x4x256xf32> to vector<2x1x256xf32>
    %29 = vector.broadcast %27 : vector<1x8x1xf32> to vector<2x8x256xf32>
    %30 = vector.broadcast %28 : vector<2x1x256xf32> to vector<2x8x256xf32>
    %31 = arith.mulf %29, %30 : vector<2x8x256xf32>
    %32 = arith.addf %24, %31 : vector<2x8x256xf32>
    %c0_11 = arith.constant 0 : index
    %c0_12 = arith.constant 0 : index
    %33 = vector.load %arg3[%c0_11, %c0_12] : memref<8x1xf32, #tpu.memory_space<vmem>>, vector<8x1xf32>
    %34 = vector.shape_cast %33 : vector<8x1xf32> to vector<1x8x1xf32>
    %35 = vector.broadcast %34 : vector<1x8x1xf32> to vector<2x8x256xf32>
    %36 = arith.addf %32, %35 : vector<2x8x256xf32>
    %cst = arith.constant 0.000000e+00 : f32
    %37 = vector.broadcast %cst : f32 to vector<2x8x256xf32>
    %38 = arith.maximumf %36, %37 : vector<2x8x256xf32>
    %cst_13 = arith.constant 0.000000e+00 : f32
    %39 = vector.broadcast %cst_13 : f32 to vector<2x8x16xf32>
    %40 = vector.extract_strided_slice %38 {offsets = [0, 0, 0], sizes = [2, 8, 240], strides = [1, 1, 1]} : vector<2x8x256xf32> to vector<2x8x240xf32>
    %41 = tpu.concatenate %39, %40 in 2 : vector<2x8x16xf32>, vector<2x8x240xf32> -> vector<2x8x256xf32>
    %42 = vector.extract_strided_slice %38 {offsets = [0, 0, 16], sizes = [2, 8, 240], strides = [1, 1, 1]} : vector<2x8x256xf32> to vector<2x8x240xf32>
    %43 = tpu.concatenate %42, %39 in 2 : vector<2x8x240xf32>, vector<2x8x16xf32> -> vector<2x8x256xf32>
    %c0_14 = arith.constant 0 : index
    %c0_15 = arith.constant 0 : index
    %c0_16 = arith.constant 0 : index
    %44 = vector.load %arg4[%c0_14, %c0_15, %c0_16] : memref<3x8x1xf32, #tpu.memory_space<vmem>>, vector<1x8x1xf32>
    %45 = vector.shape_cast %44 : vector<1x8x1xf32> to vector<8x1xf32>
    %46 = vector.shape_cast %45 : vector<8x1xf32> to vector<1x8x1xf32>
    %47 = vector.broadcast %46 : vector<1x8x1xf32> to vector<2x8x256xf32>
    %48 = arith.mulf %41, %47 : vector<2x8x256xf32>
    %c1_17 = arith.constant 1 : index
    %c0_18 = arith.constant 0 : index
    %c0_19 = arith.constant 0 : index
    %49 = vector.load %arg4[%c1_17, %c0_18, %c0_19] : memref<3x8x1xf32, #tpu.memory_space<vmem>>, vector<1x8x1xf32>
    %50 = vector.shape_cast %49 : vector<1x8x1xf32> to vector<8x1xf32>
    %51 = vector.shape_cast %50 : vector<8x1xf32> to vector<1x8x1xf32>
    %52 = vector.broadcast %51 : vector<1x8x1xf32> to vector<2x8x256xf32>
    %53 = arith.mulf %38, %52 : vector<2x8x256xf32>
    %54 = arith.addf %48, %53 : vector<2x8x256xf32>
    %c2_20 = arith.constant 2 : index
    %c0_21 = arith.constant 0 : index
    %c0_22 = arith.constant 0 : index
    %55 = vector.load %arg4[%c2_20, %c0_21, %c0_22] : memref<3x8x1xf32, #tpu.memory_space<vmem>>, vector<1x8x1xf32>
    %56 = vector.shape_cast %55 : vector<1x8x1xf32> to vector<8x1xf32>
    %57 = vector.shape_cast %56 : vector<8x1xf32> to vector<1x8x1xf32>
    %58 = vector.broadcast %57 : vector<1x8x1xf32> to vector<2x8x256xf32>
    %59 = arith.mulf %43, %58 : vector<2x8x256xf32>
    %60 = arith.addf %54, %59 : vector<2x8x256xf32>
    %c0_23 = arith.constant 0 : index
    %c0_24 = arith.constant 0 : index
    %61 = vector.load %arg5[%c0_23, %c0_24] : memref<8x256xf32, #tpu.memory_space<vmem>>, vector<8x256xf32>
    %62 = vector.shape_cast %61 : vector<8x256xf32> to vector<1x8x256xf32>
    %63 = vector.broadcast %62 : vector<1x8x256xf32> to vector<2x8x256xf32>
    %64 = arith.mulf %60, %63 : vector<2x8x256xf32>
    %c0_25 = arith.constant 0 : index
    %c0_26 = arith.constant 0 : index
    %65 = vector.load %arg6[%c0_25, %c0_26] : memref<8x256xf32, #tpu.memory_space<vmem>>, vector<8x256xf32>
    %66 = vector.shape_cast %65 : vector<8x256xf32> to vector<1x8x256xf32>
    %67 = vector.broadcast %66 : vector<1x8x256xf32> to vector<2x8x256xf32>
    %68 = arith.addf %64, %67 : vector<2x8x256xf32>
    %69 = vector.shape_cast %68 : vector<2x8x256xf32> to vector<16x256xf32>
    %c16_i32 = arith.constant 16 : i32
    %70 = tpu.dynamic_rotate %69 by %c16_i32 dim 1 : vector<16x256xf32>, i32 -> vector<16x256xf32>
    %71 = arith.addf %69, %70 : vector<16x256xf32>
    %c32_i32 = arith.constant 32 : i32
    %72 = tpu.dynamic_rotate %71 by %c32_i32 dim 1 : vector<16x256xf32>, i32 -> vector<16x256xf32>
    %73 = arith.addf %71, %72 : vector<16x256xf32>
    %c64_i32 = arith.constant 64 : i32
    %74 = tpu.dynamic_rotate %73 by %c64_i32 dim 1 : vector<16x256xf32>, i32 -> vector<16x256xf32>
    %75 = arith.addf %73, %74 : vector<16x256xf32>
    %c128_i32 = arith.constant 128 : i32
    %76 = tpu.dynamic_rotate %75 by %c128_i32 dim 1 : vector<16x256xf32>, i32 -> vector<16x256xf32>
    %77 = arith.addf %75, %76 : vector<16x256xf32>
    %78 = vector.shape_cast %77 : vector<16x256xf32> to vector<2x8x256xf32>
    %cst_27 = arith.constant 0.000000e+00 : f32
    %79 = vector.broadcast %cst_27 : f32 to vector<2x8x1xf32>
    %80 = vector.extract_strided_slice %78 {offsets = [0, 0, 0], sizes = [2, 8, 255], strides = [1, 1, 1]} : vector<2x8x256xf32> to vector<2x8x255xf32>
    %81 = tpu.concatenate %79, %80 in 2 : vector<2x8x1xf32>, vector<2x8x255xf32> -> vector<2x8x256xf32>
    %82 = vector.extract_strided_slice %78 {offsets = [0, 0, 1], sizes = [2, 8, 255], strides = [1, 1, 1]} : vector<2x8x256xf32> to vector<2x8x255xf32>
    %83 = tpu.concatenate %82, %79 in 2 : vector<2x8x255xf32>, vector<2x8x1xf32> -> vector<2x8x256xf32>
    %c0_28 = arith.constant 0 : index
    %c0_29 = arith.constant 0 : index
    %84 = vector.load %arg7[%c0_28, %c0_29] : memref<8x256xf32, #tpu.memory_space<vmem>>, vector<8x256xf32>
    %85 = vector.shape_cast %84 : vector<8x256xf32> to vector<1x8x256xf32>
    %86 = vector.broadcast %85 : vector<1x8x256xf32> to vector<2x8x256xf32>
    %87 = arith.mulf %81, %86 : vector<2x8x256xf32>
    %c0_30 = arith.constant 0 : index
    %c0_31 = arith.constant 0 : index
    %88 = vector.load %arg8[%c0_30, %c0_31] : memref<8x1xf32, #tpu.memory_space<vmem>>, vector<8x1xf32>
    %89 = vector.shape_cast %88 : vector<8x1xf32> to vector<1x8x1xf32>
    %90 = vector.broadcast %89 : vector<1x8x1xf32> to vector<2x8x256xf32>
    %91 = arith.mulf %78, %90 : vector<2x8x256xf32>
    %92 = arith.addf %87, %91 : vector<2x8x256xf32>
    %c0_32 = arith.constant 0 : index
    %c0_33 = arith.constant 0 : index
    %93 = vector.load %arg9[%c0_32, %c0_33] : memref<8x256xf32, #tpu.memory_space<vmem>>, vector<8x256xf32>
    %94 = vector.shape_cast %93 : vector<8x256xf32> to vector<1x8x256xf32>
    %95 = vector.broadcast %94 : vector<1x8x256xf32> to vector<2x8x256xf32>
    %96 = arith.mulf %83, %95 : vector<2x8x256xf32>
    %97 = arith.addf %92, %96 : vector<2x8x256xf32>
    %c0_34 = arith.constant 0 : index
    %c0_35 = arith.constant 0 : index
    %98 = vector.load %arg10[%c0_34, %c0_35] : memref<8x1xf32, #tpu.memory_space<vmem>>, vector<8x1xf32>
    %99 = vector.shape_cast %98 : vector<8x1xf32> to vector<1x8x1xf32>
    %100 = vector.broadcast %99 : vector<1x8x1xf32> to vector<2x8x256xf32>
    %101 = arith.addf %97, %100 : vector<2x8x256xf32>
    %102 = arith.negf %101 : vector<2x8x256xf32>
    %103 = math.exp %102 : vector<2x8x256xf32>
    %cst_36 = arith.constant 1.000000e+00 : f32
    %104 = vector.broadcast %cst_36 : f32 to vector<2x8x256xf32>
    %105 = arith.addf %104, %103 : vector<2x8x256xf32>
    %106 = arith.divf %104, %105 : vector<2x8x256xf32>
    %107 = arith.mulf %101, %106 : vector<2x8x256xf32>
    %c0_37 = arith.constant 0 : index
    %c0_38 = arith.constant 0 : index
    %c0_39 = arith.constant 0 : index
    %108 = vector.load %arg11[%c0_37, %c0_38, %c0_39] : memref<8x8x1xf32, #tpu.memory_space<vmem>>, vector<1x8x1xf32>
    %109 = vector.shape_cast %108 : vector<1x8x1xf32> to vector<8x1xf32>
    %110 = vector.shape_cast %109 : vector<8x1xf32> to vector<1x8x1xf32>
    %111 = vector.extract_strided_slice %107 {offsets = [0, 0, 0], sizes = [2, 1, 256], strides = [1, 1, 1]} : vector<2x8x256xf32> to vector<2x1x256xf32>
    %112 = vector.broadcast %110 : vector<1x8x1xf32> to vector<2x8x256xf32>
    %113 = vector.broadcast %111 : vector<2x1x256xf32> to vector<2x8x256xf32>
    %114 = arith.mulf %112, %113 : vector<2x8x256xf32>
    %c1_40 = arith.constant 1 : index
    %c0_41 = arith.constant 0 : index
    %c0_42 = arith.constant 0 : index
    %115 = vector.load %arg11[%c1_40, %c0_41, %c0_42] : memref<8x8x1xf32, #tpu.memory_space<vmem>>, vector<1x8x1xf32>
    %116 = vector.shape_cast %115 : vector<1x8x1xf32> to vector<8x1xf32>
    %117 = vector.shape_cast %116 : vector<8x1xf32> to vector<1x8x1xf32>
    %118 = vector.extract_strided_slice %107 {offsets = [0, 1, 0], sizes = [2, 1, 256], strides = [1, 1, 1]} : vector<2x8x256xf32> to vector<2x1x256xf32>
    %119 = vector.broadcast %117 : vector<1x8x1xf32> to vector<2x8x256xf32>
    %120 = vector.broadcast %118 : vector<2x1x256xf32> to vector<2x8x256xf32>
    %121 = arith.mulf %119, %120 : vector<2x8x256xf32>
    %122 = arith.addf %114, %121 : vector<2x8x256xf32>
    %c2_43 = arith.constant 2 : index
    %c0_44 = arith.constant 0 : index
    %c0_45 = arith.constant 0 : index
    %123 = vector.load %arg11[%c2_43, %c0_44, %c0_45] : memref<8x8x1xf32, #tpu.memory_space<vmem>>, vector<1x8x1xf32>
    %124 = vector.shape_cast %123 : vector<1x8x1xf32> to vector<8x1xf32>
    %125 = vector.shape_cast %124 : vector<8x1xf32> to vector<1x8x1xf32>
    %126 = vector.extract_strided_slice %107 {offsets = [0, 2, 0], sizes = [2, 1, 256], strides = [1, 1, 1]} : vector<2x8x256xf32> to vector<2x1x256xf32>
    %127 = vector.broadcast %125 : vector<1x8x1xf32> to vector<2x8x256xf32>
    %128 = vector.broadcast %126 : vector<2x1x256xf32> to vector<2x8x256xf32>
    %129 = arith.mulf %127, %128 : vector<2x8x256xf32>
    %130 = arith.addf %122, %129 : vector<2x8x256xf32>
    %c3_46 = arith.constant 3 : index
    %c0_47 = arith.constant 0 : index
    %c0_48 = arith.constant 0 : index
    %131 = vector.load %arg11[%c3_46, %c0_47, %c0_48] : memref<8x8x1xf32, #tpu.memory_space<vmem>>, vector<1x8x1xf32>
    %132 = vector.shape_cast %131 : vector<1x8x1xf32> to vector<8x1xf32>
    %133 = vector.shape_cast %132 : vector<8x1xf32> to vector<1x8x1xf32>
    %134 = vector.extract_strided_slice %107 {offsets = [0, 3, 0], sizes = [2, 1, 256], strides = [1, 1, 1]} : vector<2x8x256xf32> to vector<2x1x256xf32>
    %135 = vector.broadcast %133 : vector<1x8x1xf32> to vector<2x8x256xf32>
    %136 = vector.broadcast %134 : vector<2x1x256xf32> to vector<2x8x256xf32>
    %137 = arith.mulf %135, %136 : vector<2x8x256xf32>
    %138 = arith.addf %130, %137 : vector<2x8x256xf32>
    %c4 = arith.constant 4 : index
    %c0_49 = arith.constant 0 : index
    %c0_50 = arith.constant 0 : index
    %139 = vector.load %arg11[%c4, %c0_49, %c0_50] : memref<8x8x1xf32, #tpu.memory_space<vmem>>, vector<1x8x1xf32>
    %140 = vector.shape_cast %139 : vector<1x8x1xf32> to vector<8x1xf32>
    %141 = vector.shape_cast %140 : vector<8x1xf32> to vector<1x8x1xf32>
    %142 = vector.extract_strided_slice %107 {offsets = [0, 4, 0], sizes = [2, 1, 256], strides = [1, 1, 1]} : vector<2x8x256xf32> to vector<2x1x256xf32>
    %143 = vector.broadcast %141 : vector<1x8x1xf32> to vector<2x8x256xf32>
    %144 = vector.broadcast %142 : vector<2x1x256xf32> to vector<2x8x256xf32>
    %145 = arith.mulf %143, %144 : vector<2x8x256xf32>
    %146 = arith.addf %138, %145 : vector<2x8x256xf32>
    %c5 = arith.constant 5 : index
    %c0_51 = arith.constant 0 : index
    %c0_52 = arith.constant 0 : index
    %147 = vector.load %arg11[%c5, %c0_51, %c0_52] : memref<8x8x1xf32, #tpu.memory_space<vmem>>, vector<1x8x1xf32>
    %148 = vector.shape_cast %147 : vector<1x8x1xf32> to vector<8x1xf32>
    %149 = vector.shape_cast %148 : vector<8x1xf32> to vector<1x8x1xf32>
    %150 = vector.extract_strided_slice %107 {offsets = [0, 5, 0], sizes = [2, 1, 256], strides = [1, 1, 1]} : vector<2x8x256xf32> to vector<2x1x256xf32>
    %151 = vector.broadcast %149 : vector<1x8x1xf32> to vector<2x8x256xf32>
    %152 = vector.broadcast %150 : vector<2x1x256xf32> to vector<2x8x256xf32>
    %153 = arith.mulf %151, %152 : vector<2x8x256xf32>
    %154 = arith.addf %146, %153 : vector<2x8x256xf32>
    %c6 = arith.constant 6 : index
    %c0_53 = arith.constant 0 : index
    %c0_54 = arith.constant 0 : index
    %155 = vector.load %arg11[%c6, %c0_53, %c0_54] : memref<8x8x1xf32, #tpu.memory_space<vmem>>, vector<1x8x1xf32>
    %156 = vector.shape_cast %155 : vector<1x8x1xf32> to vector<8x1xf32>
    %157 = vector.shape_cast %156 : vector<8x1xf32> to vector<1x8x1xf32>
    %158 = vector.extract_strided_slice %107 {offsets = [0, 6, 0], sizes = [2, 1, 256], strides = [1, 1, 1]} : vector<2x8x256xf32> to vector<2x1x256xf32>
    %159 = vector.broadcast %157 : vector<1x8x1xf32> to vector<2x8x256xf32>
    %160 = vector.broadcast %158 : vector<2x1x256xf32> to vector<2x8x256xf32>
    %161 = arith.mulf %159, %160 : vector<2x8x256xf32>
    %162 = arith.addf %154, %161 : vector<2x8x256xf32>
    %c7 = arith.constant 7 : index
    %c0_55 = arith.constant 0 : index
    %c0_56 = arith.constant 0 : index
    %163 = vector.load %arg11[%c7, %c0_55, %c0_56] : memref<8x8x1xf32, #tpu.memory_space<vmem>>, vector<1x8x1xf32>
    %164 = vector.shape_cast %163 : vector<1x8x1xf32> to vector<8x1xf32>
    %165 = vector.shape_cast %164 : vector<8x1xf32> to vector<1x8x1xf32>
    %166 = vector.extract_strided_slice %107 {offsets = [0, 7, 0], sizes = [2, 1, 256], strides = [1, 1, 1]} : vector<2x8x256xf32> to vector<2x1x256xf32>
    %167 = vector.broadcast %165 : vector<1x8x1xf32> to vector<2x8x256xf32>
    %168 = vector.broadcast %166 : vector<2x1x256xf32> to vector<2x8x256xf32>
    %169 = arith.mulf %167, %168 : vector<2x8x256xf32>
    %170 = arith.addf %162, %169 : vector<2x8x256xf32>
    %171 = arith.addf %68, %170 : vector<2x8x256xf32>
    %cst_57 = arith.constant 0.000000e+00 : f32
    %172 = vector.broadcast %cst_57 : f32 to vector<2x8x256xf32>
    %173 = arith.maximumf %171, %172 : vector<2x8x256xf32>
    %174 = vector.shape_cast %173 : vector<2x8x256xf32> to vector<16x256xf32>
    %175 = arith.truncf %174 : vector<16x256xf32> to vector<16x256xbf16>
    %c0_58 = arith.constant 0 : index
    %c0_59 = arith.constant 0 : index
    %176 = vector.load %arg12[%c0_58, %c0_59] : memref<16x256xbf16, #tpu.memory_space<vmem>>, vector<16x256xbf16>
    tpu.vector_store %arg12[%c0_58, %c0_59], %175 {strides = array<i32>} : memref<16x256xbf16, #tpu.memory_space<vmem>>, vector<16x256xbf16>,
    return
  }
  func.func @transform_0(%arg0: i32) -> (i32, i32, i32) {
    %c0_i32 = arith.constant 0 : i32
    %c0_i32_0 = arith.constant 0 : i32
    %c0_i32_1 = arith.constant 0 : i32
    return %arg0, %c0_i32, %c0_i32_0 : i32, i32, i32
  }
  func.func @transform_1(%arg0: i32) -> (i32, i32, i32) {
    %c0_i32 = arith.constant 0 : i32
    %c0_i32_0 = arith.constant 0 : i32
    %c0_i32_1 = arith.constant 0 : i32
    %c0_i32_2 = arith.constant 0 : i32
    return %c0_i32, %c0_i32_0, %c0_i32_1 : i32, i32, i32
  }
  func.func @transform_2(%arg0: i32) -> (i32, i32) {
    %c0_i32 = arith.constant 0 : i32
    %c0_i32_0 = arith.constant 0 : i32
    %c0_i32_1 = arith.constant 0 : i32
    return %c0_i32, %c0_i32_0 : i32, i32
  }
  func.func @transform_3(%arg0: i32) -> (i32, i32, i32) {
    %c0_i32 = arith.constant 0 : i32
    %c0_i32_0 = arith.constant 0 : i32
    %c0_i32_1 = arith.constant 0 : i32
    %c0_i32_2 = arith.constant 0 : i32
    return %c0_i32, %c0_i32_0, %c0_i32_1 : i32, i32, i32
  }
  func.func @transform_4(%arg0: i32) -> (i32, i32) {
    %c0_i32 = arith.constant 0 : i32
    %c0_i32_0 = arith.constant 0 : i32
    %c0_i32_1 = arith.constant 0 : i32
    return %c0_i32, %c0_i32_0 : i32, i32
  }
  func.func @transform_5(%arg0: i32) -> (i32, i32) {
    %c0_i32 = arith.constant 0 : i32
    %c0_i32_0 = arith.constant 0 : i32
    %c0_i32_1 = arith.constant 0 : i32
    return %c0_i32, %c0_i32_0 : i32, i32
  }
  func.func @transform_6(%arg0: i32) -> (i32, i32) {
    %c0_i32 = arith.constant 0 : i32
    %c0_i32_0 = arith.constant 0 : i32
    %c0_i32_1 = arith.constant 0 : i32
    return %c0_i32, %c0_i32_0 : i32, i32
  }
  func.func @transform_7(%arg0: i32) -> (i32, i32) {
    %c0_i32 = arith.constant 0 : i32
    %c0_i32_0 = arith.constant 0 : i32
    %c0_i32_1 = arith.constant 0 : i32
    return %c0_i32, %c0_i32_0 : i32, i32
  }
  func.func @transform_8(%arg0: i32) -> (i32, i32) {
    %c0_i32 = arith.constant 0 : i32
    %c0_i32_0 = arith.constant 0 : i32
    %c0_i32_1 = arith.constant 0 : i32
    return %c0_i32, %c0_i32_0 : i32, i32
  }
  func.func @transform_9(%arg0: i32) -> (i32, i32) {
    %c0_i32 = arith.constant 0 : i32
    %c0_i32_0 = arith.constant 0 : i32
    %c0_i32_1 = arith.constant 0 : i32
    return %c0_i32, %c0_i32_0 : i32, i32
  }
  func.func @transform_10(%arg0: i32) -> (i32, i32, i32) {
    %c0_i32 = arith.constant 0 : i32
    %c0_i32_0 = arith.constant 0 : i32
    %c0_i32_1 = arith.constant 0 : i32
    %c0_i32_2 = arith.constant 0 : i32
    return %c0_i32, %c0_i32_0, %c0_i32_1 : i32, i32, i32
  }
  func.func @transform_11(%arg0: i32) -> (i32, i32) {
    %c0_i32 = arith.constant 0 : i32
    %c0_i32_0 = arith.constant 0 : i32
    return %arg0, %c0_i32 : i32, i32
  }
}

</mosaic_0001>

<llo_original>
// kernel: tpu_custom_call.1
$region0: #{tpu_custom_call.1}
  #allocation0 [shape = 'u32[]', space=smem, size = 0x4, offset = 0x4, fixed_abs, tag = 'smem constant byte address 0x4 - core index']
  #allocation1 [shape = 'u32[144,128]{1,0:T(1,128)}', space=vmem, size = 0x12000, scoped, tag = 'internal scratch']
  %s0 = inlined_call_operand.vmem [shape: bf16[2,4,256], index: 0, kind: input, shape index: {}]
  %s1 = inlined_call_operand.vmem [shape: f32[4,8,1], index: 1, kind: input, shape index: {}]
  %s2 = inlined_call_operand.vmem [shape: f32[8,1], index: 2, kind: input, shape index: {}]
  %s3 = inlined_call_operand.vmem [shape: f32[3,8,1], index: 3, kind: input, shape index: {}]
  %s4 = inlined_call_operand.vmem [shape: f32[8,256], index: 4, kind: input, shape index: {}]
  %s5 = inlined_call_operand.vmem [shape: f32[8,256], index: 5, kind: input, shape index: {}]
  %s6 = inlined_call_operand.vmem [shape: f32[8,256], index: 6, kind: input, shape index: {}]
  %s7 = inlined_call_operand.vmem [shape: f32[8,1], index: 7, kind: input, shape index: {}]
  %s8 = inlined_call_operand.vmem [shape: f32[8,256], index: 8, kind: input, shape index: {}]
  %s9 = inlined_call_operand.vmem [shape: f32[8,1], index: 9, kind: input, shape index: {}]
  %s10 = inlined_call_operand.vmem [shape: f32[8,8,1], index: 10, kind: input, shape index: {}]
  %s11 = inlined_call_operand.hbm [shape: bf16[16,256], index: 11, kind: output, shape index: {}]
  %s12 = sld [smem:[#allocation0]]
  $region54: #{tpu_custom_call.1} parent=0
    _
  %s14 = ssub.s32 1, %s12
  %s15 = scalar_select 0, %s14, %s12
  $region1: #{tpu_custom_call.1} parent=0
    #allocation2 [shape = 'u8[8192]{0}', space=vmem, size = 0x2000, scoped, tag = 'output window, operand 0, single buffered']
    #allocation3 [shape = 's32[1]{0}', space=sflag, size = 0x4, scoped, tag = 'scoped memory for tpu_custom_call.1']
    %16 = vsyncpa [#allocation3], 0
    // Predicated region
    $region2: #{tpu_custom_call.1} parent=1 // pred_check
      _
    $region3: #{tpu_custom_call.1} parent=1 // pred_check_branch
      %18 = sbr.rel (0) target = $region5
    $region4: #{tpu_custom_call.1} parent=1 // pred_region
      _
    $region5: #{tpu_custom_call.1} parent=1 // pred_fallthru
      _
    // Predicated region
    $region6: #{tpu_custom_call.1} parent=1 // pred_check
      _
    $region7: #{tpu_custom_call.1} parent=1 // pred_check_branch
      %20 = sbr.rel (0) target = $region9
    $region8: #{tpu_custom_call.1} parent=1 // pred_region
      _
    $region9: #{tpu_custom_call.1} parent=1 // pred_fallthru
      _
    // Predicated region
    $region10: #{tpu_custom_call.1} parent=1 // pred_check
      _
    $region11: #{tpu_custom_call.1} parent=1 // pred_check_branch
      %22 = sbr.rel (0) target = $region13
    $region12: #{tpu_custom_call.1} parent=1 // pred_region
      _
    $region13: #{tpu_custom_call.1} parent=1 // pred_fallthru
      _
    // Predicated region
    $region14: #{tpu_custom_call.1} parent=1 // pred_check
      _
    $region15: #{tpu_custom_call.1} parent=1 // pred_check_branch
      %24 = sbr.rel (0) target = $region17
    $region16: #{tpu_custom_call.1} parent=1 // pred_region
      _
    $region17: #{tpu_custom_call.1} parent=1 // pred_fallthru
      _
    // Predicated region
    $region18: #{tpu_custom_call.1} parent=1 // pred_check
      _
    $region19: #{tpu_custom_call.1} parent=1 // pred_check_branch
      %26 = sbr.rel (0) target = $region21
    $region20: #{tpu_custom_call.1} parent=1 // pred_region
      _
    $region21: #{tpu_custom_call.1} parent=1 // pred_fallthru
      _
    // Predicated region
    $region22: #{tpu_custom_call.1} parent=1 // pred_check
      _
    $region23: #{tpu_custom_call.1} parent=1 // pred_check_branch
      %28 = sbr.rel (0) target = $region25
    $region24: #{tpu_custom_call.1} parent=1 // pred_region
      _
    $region25: #{tpu_custom_call.1} parent=1 // pred_fallthru
      _
    // Predicated region
    $region26: #{tpu_custom_call.1} parent=1 // pred_check
      _
    $region27: #{tpu_custom_call.1} parent=1 // pred_check_branch
      %30 = sbr.rel (0) target = $region29
    $region28: #{tpu_custom_call.1} parent=1 // pred_region
      _
    $region29: #{tpu_custom_call.1} parent=1 // pred_fallthru
      _
    // Predicated region
    $region30: #{tpu_custom_call.1} parent=1 // pred_check
      _
    $region31: #{tpu_custom_call.1} parent=1 // pred_check_branch
      %32 = sbr.rel (0) target = $region33
    $region32: #{tpu_custom_call.1} parent=1 // pred_region
      _
    $region33: #{tpu_custom_call.1} parent=1 // pred_fallthru
      _
    // Predicated region
    $region34: #{tpu_custom_call.1} parent=1 // pred_check
      _
    $region35: #{tpu_custom_call.1} parent=1 // pred_check_branch
      %34 = sbr.rel (0) target = $region37
    $region36: #{tpu_custom_call.1} parent=1 // pred_region
      _
    $region37: #{tpu_custom_call.1} parent=1 // pred_fallthru
      _
    // Predicated region
    $region38: #{tpu_custom_call.1} parent=1 // pred_check
      _
    $region39: #{tpu_custom_call.1} parent=1 // pred_check_branch
      %36 = sbr.rel (0) target = $region41
    $region40: #{tpu_custom_call.1} parent=1 // pred_region
      _
    $region41: #{tpu_custom_call.1} parent=1 // pred_fallthru
      _
    // Predicated region
    $region42: #{tpu_custom_call.1} parent=1 // pred_check
      _
    $region43: #{tpu_custom_call.1} parent=1 // pred_check_branch
      %38 = sbr.rel (0) target = $region45
    $region44: #{tpu_custom_call.1} parent=1 // pred_region
      _
    $region45: #{tpu_custom_call.1} parent=1 // pred_fallthru
      _
    %v39 = vld [vmem:[%s0] sm:$0xf]
    %v40 = vld [vmem:[%s0 + $0x4] sm:$0xf]
    %v41 = vunpack.c.l.bf16 %v39
    %v42 = vunpack.c.l.bf16 %v40
    %v43 = vld [vmem:[%s1] sm:$0xff]
    %45 = vset.pattern.permute.xlu0 0
    %46 = vperm.xlu0 %45, %v43
    %v47 = vpop.permute.xlu0 %46
    %v51 = vlaneseq
    %v52 = vshrl.u32 %v51, 7
    %v53 = vsub.s32 0, %v52
    %v54 = vrot.slane %v41, %v53
    %v55 = vlaneseq
    %v56 = vshrl.u32 %v55, 7
    %v57 = vsub.s32 4, %v56
    %v58 = vrot.slane %v41, %v57
    %v59 = vlaneseq
    %v60 = vshrl.u32 %v59, 7
    %v61 = vsub.s32 0, %v60
    %v62 = vrot.slane %v42, %v61
    %v63 = vlaneseq
    %v64 = vshrl.u32 %v63, 7
    %v65 = vsub.s32 4, %v64
    %v66 = vrot.slane %v42, %v65
    %v71 = vlaneseq
    %v72 = vshrl.u32 %v71, 7
    %v73 = vsub.s32 0, %v72
    %v74 = vrot.slane %v54, %v73
    %v75 = vlaneseq
    %v76 = vshrl.u32 %v75, 7
    %v77 = vsub.s32 0, %v76
    %v78 = vrot.slane %v58, %v77
    %v79 = vlaneseq
    %v80 = vshrl.u32 %v79, 7
    %v81 = vsub.s32 0, %v80
    %v82 = vrot.slane %v62, %v81
    %v83 = vlaneseq
    %v84 = vshrl.u32 %v83, 7
    %v85 = vsub.s32 0, %v84
    %v86 = vrot.slane %v66, %v85
    %v87 = vmul.f32 %v47, %v74
    %v88 = vmul.f32 %v47, %v78
    %v89 = vmul.f32 %v47, %v82
    %v90 = vmul.f32 %v47, %v86
    %s91 = scalar_lea.vmem %s1, 8
    %v92 = vld [vmem:[%s91] sm:$0xff]
    %94 = vset.pattern.permute.xlu0 0
    %95 = vperm.xlu0 %94, %v92
    %v96 = vpop.permute.xlu0 %95
    %v98 = vlaneseq
    %v99 = vshrl.u32 %v98, 7
    %v100 = vsub.s32 1, %v99
    %v101 = vrot.slane %v41, %v100
    %v102 = vlaneseq
    %v103 = vshrl.u32 %v102, 7
    %v104 = vsub.s32 5, %v103
    %v105 = vrot.slane %v41, %v104
    %v106 = vlaneseq
    %v107 = vshrl.u32 %v106, 7
    %v108 = vsub.s32 1, %v107
    %v109 = vrot.slane %v42, %v108
    %v110 = vlaneseq
    %v111 = vshrl.u32 %v110, 7
    %v112 = vsub.s32 5, %v111
    %v113 = vrot.slane %v42, %v112
    %v118 = vlaneseq
    %v119 = vshrl.u32 %v118, 7
    %v120 = vsub.s32 1, %v119
    %v121 = vrot.slane %v101, %v120
    %v122 = vlaneseq
    %v123 = vshrl.u32 %v122, 7
    %v124 = vsub.s32 1, %v123
    %v125 = vrot.slane %v105, %v124
    %v126 = vlaneseq
    %v127 = vshrl.u32 %v126, 7
    %v128 = vsub.s32 1, %v127
    %v129 = vrot.slane %v109, %v128
    %v130 = vlaneseq
    %v131 = vshrl.u32 %v130, 7
    %v132 = vsub.s32 1, %v131
    %v133 = vrot.slane %v113, %v132
    %v134 = vmul.f32 %v96, %v121
    %v135 = vmul.f32 %v96, %v125
    %v136 = vmul.f32 %v96, %v129
    %v137 = vmul.f32 %v96, %v133
    %v138 = vadd.f32 %v87, %v134
    %v139 = vadd.f32 %v88, %v135
    %v140 = vadd.f32 %v89, %v136
    %v141 = vadd.f32 %v90, %v137
    %s142 = scalar_lea.vmem %s1, 16
    %v143 = vld [vmem:[%s142] sm:$0xff]
    %145 = vset.pattern.permute.xlu0 0
    %146 = vperm.xlu0 %145, %v143
    %v147 = vpop.permute.xlu0 %146
    %v149 = vlaneseq
    %v150 = vshrl.u32 %v149, 7
    %v151 = vsub.s32 2, %v150
    %v152 = vrot.slane %v41, %v151
    %v153 = vlaneseq
    %v154 = vshrl.u32 %v153, 7
    %v155 = vsub.s32 6, %v154
    %v156 = vrot.slane %v41, %v155
    %v157 = vlaneseq
    %v158 = vshrl.u32 %v157, 7
    %v159 = vsub.s32 2, %v158
    %v160 = vrot.slane %v42, %v159
    %v161 = vlaneseq
    %v162 = vshrl.u32 %v161, 7
    %v163 = vsub.s32 6, %v162
    %v164 = vrot.slane %v42, %v163
    %v169 = vlaneseq
    %v170 = vshrl.u32 %v169, 7
    %v171 = vsub.s32 2, %v170
    %v172 = vrot.slane %v152, %v171
    %v173 = vlaneseq
    %v174 = vshrl.u32 %v173, 7
    %v175 = vsub.s32 2, %v174
    %v176 = vrot.slane %v156, %v175
    %v177 = vlaneseq
    %v178 = vshrl.u32 %v177, 7
    %v179 = vsub.s32 2, %v178
    %v180 = vrot.slane %v160, %v179
    %v181 = vlaneseq
    %v182 = vshrl.u32 %v181, 7
    %v183 = vsub.s32 2, %v182
    %v184 = vrot.slane %v164, %v183
    %v185 = vmul.f32 %v147, %v172
    %v186 = vmul.f32 %v147, %v176
    %v187 = vmul.f32 %v147, %v180
    %v188 = vmul.f32 %v147, %v184
    %v189 = vadd.f32 %v138, %v185
    %v190 = vadd.f32 %v139, %v186
    %v191 = vadd.f32 %v140, %v187
    %v192 = vadd.f32 %v141, %v188
    %s193 = scalar_lea.vmem %s1, 24
    %v194 = vld [vmem:[%s193] sm:$0xff]
    %196 = vset.pattern.permute.xlu0 0
    %197 = vperm.xlu0 %196, %v194
    %v198 = vpop.permute.xlu0 %197
    %v200 = vlaneseq
    %v201 = vshrl.u32 %v200, 7
    %v202 = vsub.s32 3, %v201
    %v203 = vrot.slane %v41, %v202
    %v204 = vlaneseq
    %v205 = vshrl.u32 %v204, 7
    %v206 = vsub.s32 7, %v205
    %v207 = vrot.slane %v41, %v206
    %v208 = vlaneseq
    %v209 = vshrl.u32 %v208, 7
    %v210 = vsub.s32 3, %v209
    %v211 = vrot.slane %v42, %v210
    %v212 = vlaneseq
    %v213 = vshrl.u32 %v212, 7
    %v214 = vsub.s32 7, %v213
    %v215 = vrot.slane %v42, %v214
    %v220 = vlaneseq
    %v221 = vshrl.u32 %v220, 7
    %v222 = vsub.s32 3, %v221
    %v223 = vrot.slane %v203, %v222
    %v224 = vlaneseq
    %v225 = vshrl.u32 %v224, 7
    %v226 = vsub.s32 3, %v225
    %v227 = vrot.slane %v207, %v226
    %v228 = vlaneseq
    %v229 = vshrl.u32 %v228, 7
    %v230 = vsub.s32 3, %v229
    %v231 = vrot.slane %v211, %v230
    %v232 = vlaneseq
    %v233 = vshrl.u32 %v232, 7
    %v234 = vsub.s32 3, %v233
    %v235 = vrot.slane %v215, %v234
    %v236 = vmul.f32 %v198, %v223
    %v237 = vmul.f32 %v198, %v227
    %v238 = vmul.f32 %v198, %v231
    %v239 = vmul.f32 %v198, %v235
    %v240 = vadd.f32 %v189, %v236
    %v241 = vadd.f32 %v190, %v237
    %v242 = vadd.f32 %v191, %v238
    %v243 = vadd.f32 %v192, %v239
    %v244 = vld [vmem:[%s2] sm:$0xff]
    %246 = vset.pattern.permute.xlu0 0
    %247 = vperm.xlu0 %246, %v244
    %v248 = vpop.permute.xlu0 %247
    %v250 = vadd.f32 %v240, %v248
    %v251 = vadd.f32 %v241, %v248
    %v252 = vadd.f32 %v242, %v248
    %v253 = vadd.f32 %v243, %v248
    %v254 = vmax.f32 %v250, 0.0
    %v255 = vmax.f32 %v251, 0.0
    %v256 = vmax.f32 %v252, 0.0
    %v257 = vmax.f32 %v253, 0.0
    %262 = vrot.lane.b32.xlu0 %v254, 16
    %v263 = vpop.permute.xlu0 %262
    %264 = vrot.lane.b32.xlu0 %v255, 16
    %v265 = vpop.permute.xlu0 %264
    %266 = vrot.lane.b32.xlu0 %v256, 16
    %v267 = vpop.permute.xlu0 %266
    %268 = vrot.lane.b32.xlu0 %v257, 16
    %v269 = vpop.permute.xlu0 %268
    %vm270 = vcmask 130048
    %v271 = vsel %vm270, %v263, %v265
    %v272 = vsel %vm270, %v267, %v269
    %v277 = vsel %vm270, 0.0, %v263
    %v278 = vsel %vm270, 0.0, %v267
    %279 = vrot.lane.b32.xlu0 %v254, 112
    %v280 = vpop.permute.xlu0 %279
    %281 = vrot.lane.b32.xlu0 %v255, 112
    %v282 = vpop.permute.xlu0 %281
    %283 = vrot.lane.b32.xlu0 %v256, 112
    %v284 = vpop.permute.xlu0 %283
    %285 = vrot.lane.b32.xlu0 %v257, 112
    %v286 = vpop.permute.xlu0 %285
    %vm287 = vcmask 916480
    %v288 = vsel %vm287, %v280, %v282
    %v289 = vsel %vm287, %v284, %v286
    %v294 = vsel %vm287, %v282, 0.0
    %v295 = vsel %vm287, %v286, 0.0
    %v296 = vld [vmem:[%s3] sm:$0xff]
    %298 = vset.pattern.permute.xlu0 0
    %299 = vperm.xlu0 %298, %v296
    %v300 = vpop.permute.xlu0 %299
    %v302 = vmul.f32 %v277, %v300
    %v303 = vmul.f32 %v271, %v300
    %v304 = vmul.f32 %v278, %v300
    %v305 = vmul.f32 %v272, %v300
    %s306 = scalar_lea.vmem %s3, 8
    %v307 = vld [vmem:[%s306] sm:$0xff]
    %309 = vset.pattern.permute.xlu0 0
    %310 = vperm.xlu0 %309, %v307
    %v311 = vpop.permute.xlu0 %310
    %v313 = vmul.f32 %v254, %v311
    %v314 = vmul.f32 %v255, %v311
    %v315 = vmul.f32 %v256, %v311
    %v316 = vmul.f32 %v257, %v311
    %v317 = vadd.f32 %v302, %v313
    %v318 = vadd.f32 %v303, %v314
    %v319 = vadd.f32 %v304, %v315
    %v320 = vadd.f32 %v305, %v316
    %s321 = scalar_lea.vmem %s3, 16
    %v322 = vld [vmem:[%s321] sm:$0xff]
    %324 = vset.pattern.permute.xlu0 0
    %325 = vperm.xlu0 %324, %v322
    %v326 = vpop.permute.xlu0 %325
    %v328 = vmul.f32 %v288, %v326
    %v329 = vmul.f32 %v294, %v326
    %v330 = vmul.f32 %v289, %v326
    %v331 = vmul.f32 %v295, %v326
    %v332 = vadd.f32 %v317, %v328
    %v333 = vadd.f32 %v318, %v329
    %v334 = vadd.f32 %v319, %v330
    %v335 = vadd.f32 %v320, %v331
    %v336 = vld [vmem:[%s4] sm:$0xff]
    %v337 = vld [vmem:[%s4 + $0x8] sm:$0xff]
    %v338 = vmul.f32 %v332, %v336
    %v339 = vmul.f32 %v333, %v337
    %v340 = vmul.f32 %v334, %v336
    %v341 = vmul.f32 %v335, %v337
    %v342 = vld [vmem:[%s5] sm:$0xff]
    %v343 = vld [vmem:[%s5 + $0x8] sm:$0xff]
    %v344 = vadd.f32 %v338, %v342
    %v345 = vadd.f32 %v339, %v343
    %v346 = vadd.f32 %v340, %v342
    %v347 = vadd.f32 %v341, %v343
    %348 = vrot.lane.b32.xlu0 %v344, 16
    %v349 = vpop.permute.xlu0 %348
    %350 = vrot.lane.b32.xlu0 %v346, 16
    %v351 = vpop.permute.xlu0 %350
    %352 = vrot.lane.b32.xlu0 %v345, 16
    %v353 = vpop.permute.xlu0 %352
    %354 = vrot.lane.b32.xlu0 %v347, 16
    %v355 = vpop.permute.xlu0 %354
    %v356 = vlaneseq
    %v357 = vand.u32 %v356, 127
    %vm358 = vcmp.lt.s32.totalorder %v357, 16
    %v359 = vsel %vm358, %v349, %v353
    %v360 = vsel %vm358, %v351, %v355
    %v361 = vsel %vm358, %v353, %v349
    %v362 = vsel %vm358, %v355, %v351
    %v363 = vadd.f32 %v344, %v361
    %v364 = vadd.f32 %v345, %v359
    %v365 = vadd.f32 %v346, %v362
    %v366 = vadd.f32 %v347, %v360
    %367 = vrot.lane.b32.xlu0 %v363, 32
    %v368 = vpop.permute.xlu0 %367
    %369 = vrot.lane.b32.xlu0 %v365, 32
    %v370 = vpop.permute.xlu0 %369
    %371 = vrot.lane.b32.xlu0 %v364, 32
    %v372 = vpop.permute.xlu0 %371
    %373 = vrot.lane.b32.xlu0 %v366, 32
    %v374 = vpop.permute.xlu0 %373
    %vm375 = vcmp.lt.s32.totalorder %v357, 32
    %v376 = vsel %vm375, %v368, %v372
    %v377 = vsel %vm375, %v370, %v374
    %v378 = vsel %vm375, %v372, %v368
    %v379 = vsel %vm375, %v374, %v370
    %v380 = vadd.f32 %v363, %v378
    %v381 = vadd.f32 %v364, %v376
    %v382 = vadd.f32 %v365, %v379
    %v383 = vadd.f32 %v366, %v377
    %384 = vrot.lane.b32.xlu0 %v380, 64
    %v385 = vpop.permute.xlu0 %384
    %386 = vrot.lane.b32.xlu0 %v382, 64
    %v387 = vpop.permute.xlu0 %386
    %388 = vrot.lane.b32.xlu0 %v381, 64
    %v389 = vpop.permute.xlu0 %388
    %390 = vrot.lane.b32.xlu0 %v383, 64
    %v391 = vpop.permute.xlu0 %390
    %vm392 = vcmp.lt.s32.totalorder %v357, 64
    %v393 = vsel %vm392, %v385, %v389
    %v394 = vsel %vm392, %v387, %v391
    %v395 = vsel %vm392, %v389, %v385
    %v396 = vsel %vm392, %v391, %v387
    %v397 = vadd.f32 %v380, %v395
    %v398 = vadd.f32 %v381, %v393
    %v399 = vadd.f32 %v382, %v396
    %v400 = vadd.f32 %v383, %v394
    %v401 = vadd.f32 %v397, %v398
    %v402 = vadd.f32 %v399, %v400
    %405 = vrot.lane.b32.xlu0 %v401, 1
    %v406 = vpop.permute.xlu0 %405
    %407 = vrot.lane.b32.xlu0 %v402, 1
    %v408 = vpop.permute.xlu0 %407
    %vm409 = vcmask 7168
    %v412 = vsel %vm409, 0.0, %v406
    %v413 = vsel %vm409, 0.0, %v408
    %414 = vrot.lane.b32.xlu0 %v401, 127
    %v415 = vpop.permute.xlu0 %414
    %416 = vrot.lane.b32.xlu0 %v402, 127
    %v417 = vpop.permute.xlu0 %416
    %vm418 = vcmask 1039360
    %v421 = vsel %vm418, %v415, 0.0
    %v422 = vsel %vm418, %v417, 0.0
    %v423 = vld [vmem:[%s6] sm:$0xff]
    %v424 = vld [vmem:[%s6 + $0x8] sm:$0xff]
    %v425 = vmul.f32 %v412, %v423
    %v426 = vmul.f32 %v406, %v424
    %v427 = vmul.f32 %v413, %v423
    %v428 = vmul.f32 %v408, %v424
    %v429 = vld [vmem:[%s7] sm:$0xff]
    %431 = vset.pattern.permute.xlu0 0
    %432 = vperm.xlu0 %431, %v429
    %v433 = vpop.permute.xlu0 %432
    %v435 = vmul.f32 %v401, %v433
    %v436 = vmul.f32 %v402, %v433
    %v437 = vadd.f32 %v425, %v435
    %v438 = vadd.f32 %v426, %v435
    %v439 = vadd.f32 %v427, %v436
    %v440 = vadd.f32 %v428, %v436
    %v441 = vld [vmem:[%s8] sm:$0xff]
    %v442 = vld [vmem:[%s8 + $0x8] sm:$0xff]
    %v443 = vmul.f32 %v415, %v441
    %v444 = vmul.f32 %v421, %v442
    %v445 = vmul.f32 %v417, %v441
    %v446 = vmul.f32 %v422, %v442
    %v447 = vadd.f32 %v437, %v443
    %v448 = vadd.f32 %v438, %v444
    %v449 = vadd.f32 %v439, %v445
    %v450 = vadd.f32 %v440, %v446
    %v451 = vld [vmem:[%s9] sm:$0xff]
    %453 = vset.pattern.permute.xlu0 0
    %454 = vperm.xlu0 %453, %v451
    %v455 = vpop.permute.xlu0 %454
    %v457 = vadd.f32 %v447, %v455
    %v458 = vadd.f32 %v448, %v455
    %v459 = vadd.f32 %v449, %v455
    %v460 = vadd.f32 %v450, %v455
    %v461 = vxor.u32 %v457, 2147483648
    %v462 = vxor.u32 %v458, 2147483648
    %v463 = vxor.u32 %v459, 2147483648
    %v464 = vxor.u32 %v460, 2147483648
    %v465 = vmul.f32 %v461, 1.442695
    %v466 = vpow.pop %v465
    %v467 = vmul.f32 %v462, 1.442695
    %v468 = vpow.pop %v467
    %v469 = vmul.f32 %v463, 1.442695
    %v470 = vpow.pop %v469
    %v471 = vmul.f32 %v464, 1.442695
    %v472 = vpow.pop %v471
    %v473 = vadd.f32 %v466, 1.0
    %v474 = vadd.f32 %v468, 1.0
    %v475 = vadd.f32 %v470, 1.0
    %v476 = vadd.f32 %v472, 1.0
    %v477 = vrcp.pop %v473
    %v478 = vmul.f32 1.0, %v477
    %v479 = vrcp.pop %v474
    %v480 = vmul.f32 1.0, %v479
    %v481 = vrcp.pop %v475
    %v482 = vmul.f32 1.0, %v481
    %v483 = vrcp.pop %v476
    %v484 = vmul.f32 1.0, %v483
    %v485 = vmul.f32 %v457, %v478
    %v486 = vmul.f32 %v458, %v480
    %v487 = vmul.f32 %v459, %v482
    %v488 = vmul.f32 %v460, %v484
    %v489 = vld [vmem:[%s10] sm:$0xff]
    %491 = vset.pattern.permute.xlu0 0
    %492 = vperm.xlu0 %491, %v489
    %v493 = vpop.permute.xlu0 %492
    %v495 = vlaneseq
    %v496 = vshrl.u32 %v495, 7
    %v497 = vsub.s32 0, %v496
    %v498 = vrot.slane %v485, %v497
    %v499 = vlaneseq
    %v500 = vshrl.u32 %v499, 7
    %v501 = vsub.s32 0, %v500
    %v502 = vrot.slane %v486, %v501
    %v503 = vlaneseq
    %v504 = vshrl.u32 %v503, 7
    %v505 = vsub.s32 0, %v504
    %v506 = vrot.slane %v487, %v505
    %v507 = vlaneseq
    %v508 = vshrl.u32 %v507, 7
    %v509 = vsub.s32 0, %v508
    %v510 = vrot.slane %v488, %v509
    %v511 = vmul.f32 %v493, %v498
    %v512 = vmul.f32 %v493, %v502
    %v513 = vmul.f32 %v493, %v506
    %v514 = vmul.f32 %v493, %v510
    %s515 = scalar_lea.vmem %s10, 8
    %v516 = vld [vmem:[%s515] sm:$0xff]
    %518 = vset.pattern.permute.xlu0 0
    %519 = vperm.xlu0 %518, %v516
    %v520 = vpop.permute.xlu0 %519
    %v522 = vlaneseq
    %v523 = vshrl.u32 %v522, 7
    %v524 = vsub.s32 1, %v523
    %v525 = vrot.slane %v485, %v524
    %v526 = vlaneseq
    %v527 = vshrl.u32 %v526, 7
    %v528 = vsub.s32 1, %v527
    %v529 = vrot.slane %v486, %v528
    %v530 = vlaneseq
    %v531 = vshrl.u32 %v530, 7
    %v532 = vsub.s32 1, %v531
    %v533 = vrot.slane %v487, %v532
    %v534 = vlaneseq
    %v535 = vshrl.u32 %v534, 7
    %v536 = vsub.s32 1, %v535
    %v537 = vrot.slane %v488, %v536
    %v538 = vmul.f32 %v520, %v525
    %v539 = vmul.f32 %v520, %v529
    %v540 = vmul.f32 %v520, %v533
    %v541 = vmul.f32 %v520, %v537
    %v542 = vadd.f32 %v511, %v538
    %v543 = vadd.f32 %v512, %v539
    %v544 = vadd.f32 %v513, %v540
    %v545 = vadd.f32 %v514, %v541
    %s546 = scalar_lea.vmem %s10, 16
    %v547 = vld [vmem:[%s546] sm:$0xff]
    %549 = vset.pattern.permute.xlu0 0
    %550 = vperm.xlu0 %549, %v547
    %v551 = vpop.permute.xlu0 %550
    %v553 = vlaneseq
    %v554 = vshrl.u32 %v553, 7
    %v555 = vsub.s32 2, %v554
    %v556 = vrot.slane %v485, %v555
    %v557 = vlaneseq
    %v558 = vshrl.u32 %v557, 7
    %v559 = vsub.s32 2, %v558
    %v560 = vrot.slane %v486, %v559
    %v561 = vlaneseq
    %v562 = vshrl.u32 %v561, 7
    %v563 = vsub.s32 2, %v562
    %v564 = vrot.slane %v487, %v563
    %v565 = vlaneseq
    %v566 = vshrl.u32 %v565, 7
    %v567 = vsub.s32 2, %v566
    %v568 = vrot.slane %v488, %v567
    %v569 = vmul.f32 %v551, %v556
    %v570 = vmul.f32 %v551, %v560
    %v571 = vmul.f32 %v551, %v564
    %v572 = vmul.f32 %v551, %v568
    %v573 = vadd.f32 %v542, %v569
    %v574 = vadd.f32 %v543, %v570
    %v575 = vadd.f32 %v544, %v571
    %v576 = vadd.f32 %v545, %v572
    %s577 = scalar_lea.vmem %s10, 24
    %v578 = vld [vmem:[%s577] sm:$0xff]
    %580 = vset.pattern.permute.xlu0 0
    %581 = vperm.xlu0 %580, %v578
    %v582 = vpop.permute.xlu0 %581
    %v584 = vlaneseq
    %v585 = vshrl.u32 %v584, 7
    %v586 = vsub.s32 3, %v585
    %v587 = vrot.slane %v485, %v586
    %v588 = vlaneseq
    %v589 = vshrl.u32 %v588, 7
    %v590 = vsub.s32 3, %v589
    %v591 = vrot.slane %v486, %v590
    %v592 = vlaneseq
    %v593 = vshrl.u32 %v592, 7
    %v594 = vsub.s32 3, %v593
    %v595 = vrot.slane %v487, %v594
    %v596 = vlaneseq
    %v597 = vshrl.u32 %v596, 7
    %v598 = vsub.s32 3, %v597
    %v599 = vrot.slane %v488, %v598
    %v600 = vmul.f32 %v582, %v587
    %v601 = vmul.f32 %v582, %v591
    %v602 = vmul.f32 %v582, %v595
    %v603 = vmul.f32 %v582, %v599
    %v604 = vadd.f32 %v573, %v600
    %v605 = vadd.f32 %v574, %v601
    %v606 = vadd.f32 %v575, %v602
    %v607 = vadd.f32 %v576, %v603
    %s608 = scalar_lea.vmem %s10, 32
    %v609 = vld [vmem:[%s608] sm:$0xff]
    %611 = vset.pattern.permute.xlu0 0
    %612 = vperm.xlu0 %611, %v609
    %v613 = vpop.permute.xlu0 %612
    %v615 = vlaneseq
    %v616 = vshrl.u32 %v615, 7
    %v617 = vsub.s32 4, %v616
    %v618 = vrot.slane %v485, %v617
    %v619 = vlaneseq
    %v620 = vshrl.u32 %v619, 7
    %v621 = vsub.s32 4, %v620
    %v622 = vrot.slane %v486, %v621
    %v623 = vlaneseq
    %v624 = vshrl.u32 %v623, 7
    %v625 = vsub.s32 4, %v624
    %v626 = vrot.slane %v487, %v625
    %v627 = vlaneseq
    %v628 = vshrl.u32 %v627, 7
    %v629 = vsub.s32 4, %v628
    %v630 = vrot.slane %v488, %v629
    %v631 = vmul.f32 %v613, %v618
    %v632 = vmul.f32 %v613, %v622
    %v633 = vmul.f32 %v613, %v626
    %v634 = vmul.f32 %v613, %v630
    %v635 = vadd.f32 %v604, %v631
    %v636 = vadd.f32 %v605, %v632
    %v637 = vadd.f32 %v606, %v633
    %v638 = vadd.f32 %v607, %v634
    %s639 = scalar_lea.vmem %s10, 40
    %v640 = vld [vmem:[%s639] sm:$0xff]
    %642 = vset.pattern.permute.xlu0 0
    %643 = vperm.xlu0 %642, %v640
    %v644 = vpop.permute.xlu0 %643
    %v646 = vlaneseq
    %v647 = vshrl.u32 %v646, 7
    %v648 = vsub.s32 5, %v647
    %v649 = vrot.slane %v485, %v648
    %v650 = vlaneseq
    %v651 = vshrl.u32 %v650, 7
    %v652 = vsub.s32 5, %v651
    %v653 = vrot.slane %v486, %v652
    %v654 = vlaneseq
    %v655 = vshrl.u32 %v654, 7
    %v656 = vsub.s32 5, %v655
    %v657 = vrot.slane %v487, %v656
    %v658 = vlaneseq
    %v659 = vshrl.u32 %v658, 7
    %v660 = vsub.s32 5, %v659
    %v661 = vrot.slane %v488, %v660
    %v662 = vmul.f32 %v644, %v649
    %v663 = vmul.f32 %v644, %v653
    %v664 = vmul.f32 %v644, %v657
    %v665 = vmul.f32 %v644, %v661
    %v666 = vadd.f32 %v635, %v662
    %v667 = vadd.f32 %v636, %v663
    %v668 = vadd.f32 %v637, %v664
    %v669 = vadd.f32 %v638, %v665
    %s670 = scalar_lea.vmem %s10, 48
    %v671 = vld [vmem:[%s670] sm:$0xff]
    %673 = vset.pattern.permute.xlu0 0
    %674 = vperm.xlu0 %673, %v671
    %v675 = vpop.permute.xlu0 %674
    %v677 = vlaneseq
    %v678 = vshrl.u32 %v677, 7
    %v679 = vsub.s32 6, %v678
    %v680 = vrot.slane %v485, %v679
    %v681 = vlaneseq
    %v682 = vshrl.u32 %v681, 7
    %v683 = vsub.s32 6, %v682
    %v684 = vrot.slane %v486, %v683
    %v685 = vlaneseq
    %v686 = vshrl.u32 %v685, 7
    %v687 = vsub.s32 6, %v686
    %v688 = vrot.slane %v487, %v687
    %v689 = vlaneseq
    %v690 = vshrl.u32 %v689, 7
    %v691 = vsub.s32 6, %v690
    %v692 = vrot.slane %v488, %v691
    %v693 = vmul.f32 %v675, %v680
    %v694 = vmul.f32 %v675, %v684
    %v695 = vmul.f32 %v675, %v688
    %v696 = vmul.f32 %v675, %v692
    %v697 = vadd.f32 %v666, %v693
    %v698 = vadd.f32 %v667, %v694
    %v699 = vadd.f32 %v668, %v695
    %v700 = vadd.f32 %v669, %v696
    %s701 = scalar_lea.vmem %s10, 56
    %v702 = vld [vmem:[%s701] sm:$0xff]
    %704 = vset.pattern.permute.xlu0 0
    %705 = vperm.xlu0 %704, %v702
    %v706 = vpop.permute.xlu0 %705
    %v708 = vlaneseq
    %v709 = vshrl.u32 %v708, 7
    %v710 = vsub.s32 7, %v709
    %v711 = vrot.slane %v485, %v710
    %v712 = vlaneseq
    %v713 = vshrl.u32 %v712, 7
    %v714 = vsub.s32 7, %v713
    %v715 = vrot.slane %v486, %v714
    %v716 = vlaneseq
    %v717 = vshrl.u32 %v716, 7
    %v718 = vsub.s32 7, %v717
    %v719 = vrot.slane %v487, %v718
    %v720 = vlaneseq
    %v721 = vshrl.u32 %v720, 7
    %v722 = vsub.s32 7, %v721
    %v723 = vrot.slane %v488, %v722
    %v724 = vmul.f32 %v706, %v711
    %v725 = vmul.f32 %v706, %v715
    %v726 = vmul.f32 %v706, %v719
    %v727 = vmul.f32 %v706, %v723
    %v728 = vadd.f32 %v697, %v724
    %v729 = vadd.f32 %v698, %v725
    %v730 = vadd.f32 %v699, %v726
    %v731 = vadd.f32 %v700, %v727
    %v732 = vadd.f32 %v344, %v728
    %v733 = vadd.f32 %v345, %v729
    %v734 = vadd.f32 %v346, %v730
    %v735 = vadd.f32 %v347, %v731
    %v736 = vmax.f32 %v732, 0.0
    %v737 = vmax.f32 %v733, 0.0
    %v738 = vmax.f32 %v734, 0.0
    %v739 = vmax.f32 %v735, 0.0
    %v740 = vpack.c.bf16 %v738, %v736
    %v741 = vpack.c.bf16 %v739, %v737
    %v744 = vunpack.c.l.b16 %v740
    %v745 = vunpack.c.l.b16 %v741
    %v746 = vunpack.c.h.b16 %v740
    %v747 = vunpack.c.h.b16 %v741
    %v748 = vpack.c.b16 %v745, %v744
    %v749 = vpack.c.b16 %v747, %v746
    %752 = vst [vmem:[#allocation2] sm:$0xff] %v748
    %753 = vst [vmem:[#allocation2 + $0x8] sm:$0xff] %v749
    // Predicated region
    $region46: #{tpu_custom_call.1} parent=1 // pred_check
      _
    $region47: #{tpu_custom_call.1} parent=1 // pred_check_branch
      %755 = sbr.rel (0) target = $region49
    $region48: #{tpu_custom_call.1} parent=1 // pred_region
      %s757 = ssub.s32 256, 256
      %758 = vsyncadd [#allocation3], %s757
      %s759 = sshll.u32 [#allocation2], 4
      %s760 = int_to_ptr.vmem [resolvable:$true] %s759
      %765 = dma.vmem_to_hbm [thread:$0]  %s760, 256, %s11, [#allocation3], 128, 128, 8
    $region49: #{tpu_custom_call.1} parent=1 // pred_fallthru
      _
    // Predicated region
    $region50: #{tpu_custom_call.1} parent=1 // pred_check
      _
    $region51: #{tpu_custom_call.1} parent=1 // pred_check_branch
      %767 = sbr.rel (0) target = $region53
    $region52: #{tpu_custom_call.1} parent=1 // pred_region
      %768 = dma.done [#allocation3], 256
    $region53: #{tpu_custom_call.1} parent=1 // pred_fallthru
      _
    %769 = vsyncpa [#allocation3], 1

</llo_original>
